<compile_context>
chip_gen: v7x
topology: tpu7x:2x2x1
jax: 0.10.0
libtpu: 0.0.40
codegen_flags: <defaults>
</compile_context>

<pallas_src>
import functools

import numpy as np
import jax
import jax.numpy as jnp
from jax import lax
from jax.experimental import pallas as pl
from jax.experimental.pallas import tpu as pltpu


# ---------------------------------------------------------------------------
# Pallas kernel 1: fused patchify-conv (backbone hot path)
#   x_ref : (TP, K)      bf16  -- TP flattened patches (K = s*s*C, im2col'd)
#   w_ref : (K, Cpad)    bf16  -- VMEM-resident weights
#   b_ref : (1, Cpad)    f32   -- VMEM-resident bias
#   o_ref : (TP, Cpad)   bf16  -- lane-dense feature rows
# ---------------------------------------------------------------------------
def _patchconv_kernel(x_ref, w_ref, b_ref, o_ref):
    acc = jnp.dot(x_ref[...], w_ref[...], preferred_element_type=jnp.float32)
    o_ref[...] = (acc + b_ref[...]).astype(o_ref.dtype)


def _vmem_limit_bytes():
    """Per-generation VMEM limit: ~48 MiB on v7x (64 MiB/TC), up to 100 MiB on
    v5e/v6e (128 MiB physical)."""
    cap = 128 * 1024 * 1024
    try:
        info = pltpu.get_tpu_info()
        cap = int(getattr(info, "vmem_capacity_bytes", cap))
    except Exception:
        pass
    return min(int(0.75 * cap), 100 * 1024 * 1024)


def _pick_block_rows(P, K, Cpad, in_itemsize, out_itemsize, w_bytes, budget_bytes):
    """Largest divisor TP of P whose double-buffered input+output blocks plus the
    resident weight slab stay inside the VMEM budget."""
    def need(tp):
        return (2 * tp * K * in_itemsize          # double-buffered input block
                + 2 * tp * Cpad * out_itemsize    # double-buffered output block
                + w_bytes + 4 * Cpad)             # resident weights + bias
    best = 1
    for d in range(1, P + 1):
        if P % d == 0 and need(d) <= budget_bytes:
            best = d
    return best


def im2col_level(images_nhwc, stride):
    """One-time XLA relayout: (N,H,W,C) -> (N, Hs*Ws, s*s*C) patches."""
    N, H, W, C = images_nhwc.shape
    s = stride
    # size_divisibility: padded batch must be divisible by every stride so the
    # feature size equals ceil(h/stride) for each valid h.
    assert H % s == 0 and W % s == 0, "padded image size must be divisible by stride"
    Hs, Ws = H // s, W // s
    x6 = images_nhwc.reshape(N, Hs, s, Ws, s, C)
    x6 = jnp.transpose(x6, (0, 1, 3, 2, 4, 5))        # (N, Hs, Ws, s, s, C)
    return x6.reshape(N, Hs * Ws, s * s * C), Hs, Ws


def patchify_conv_level(patches, w2, b, out_dtype=jnp.bfloat16):
    """patches: (N, P, K) bf16; w2: (K, Cpad) bf16; b: (1, Cpad) f32.
    Returns (N, P, Cpad) features in `out_dtype` (Cpad = lane-padded channels)."""
    N, P, K = patches.shape
    Cpad = w2.shape[-1]
    assert Cpad % 128 == 0, "output channels must be padded to 128 lanes"

    vmem_limit = _vmem_limit_bytes()
    budget = int(0.6 * vmem_limit)                    # headroom for compiler scratch
    in_isz = patches.dtype.itemsize
    out_isz = jnp.dtype(out_dtype).itemsize
    w_bytes = K * Cpad * w2.dtype.itemsize
    TP = _pick_block_rows(P, K, Cpad, in_isz, out_isz, w_bytes, budget)

    flops = 2 * N * P * K * Cpad
    bytes_accessed = (patches.size * in_isz + w_bytes + b.size * b.dtype.itemsize
                      + N * P * Cpad * out_isz)

    return pl.pallas_call(
        _patchconv_kernel,
        out_shape=jax.ShapeDtypeStruct((N, P, Cpad), out_dtype),
        grid=(P // TP, N),                            # long axis first (megacore)
        in_specs=[
            # patch rows for this (row-block, image); leading N dim squeezed away
            pl.BlockSpec((None, TP, K), lambda pb, n: (n, pb, 0)),
            # weight & bias: constant index_map -> VMEM-resident, no re-DMA
            pl.BlockSpec((K, Cpad), lambda pb, n: (0, 0)),
            pl.BlockSpec((1, Cpad), lambda pb, n: (0, 0)),
        ],
        out_specs=pl.BlockSpec((None, TP, Cpad), lambda pb, n: (n, pb, 0)),
        compiler_params=pltpu.CompilerParams(
            dimension_semantics=("parallel", "parallel"),
            vmem_limit_bytes=vmem_limit),
        cost_estimate=pl.CostEstimate(
            flops=flops, transcendentals=0, bytes_accessed=bytes_accessed),
    )(patches, w2, b)


# ---------------------------------------------------------------------------
# Pallas kernel 2: mask_out_padding
#   mask[n, i, j] = 1 (padded) unless i < ceil(h_n/stride) and j < ceil(w_n/stride)
#   One launch per level, tiled over N ("parallel"), int8 output.
# ---------------------------------------------------------------------------
def _mask_kernel(th_ref, tw_ref, o_ref):
    Hs, Ws = o_ref.shape
    rows = lax.broadcasted_iota(jnp.int32, (Hs, Ws), 0)
    cols = lax.broadcasted_iota(jnp.int32, (Hs, Ws), 1)
    padded = (rows >= th_ref[...]) | (cols >= tw_ref[...])
    o_ref[...] = padded.astype(jnp.int8)


def mask_out_padding_level(image_sizes_hw, stride, N, Hs, Ws):
    """image_sizes_hw: (N, 2) int32 of valid (h, w) per image.
    Returns bool mask of shape (N, Hs, Ws): True where padding."""
    th = jnp.minimum((image_sizes_hw[:, 0] + stride - 1) // stride, Hs)
    tw = jnp.minimum((image_sizes_hw[:, 1] + stride - 1) // stride, Ws)
    th = th.astype(jnp.int32).reshape(N, 1, 1)
    tw = tw.astype(jnp.int32).reshape(N, 1, 1)

    mask_i8 = pl.pallas_call(
        _mask_kernel,
        out_shape=jax.ShapeDtypeStruct((N, Hs, Ws), jnp.int8),
        grid=(N,),
        in_specs=[
            pl.BlockSpec((None, 1, 1), lambda n: (n, 0, 0)),
            pl.BlockSpec((None, 1, 1), lambda n: (n, 0, 0)),
        ],
        out_specs=pl.BlockSpec((None, Hs, Ws), lambda n: (n, 0, 0)),
        compiler_params=pltpu.CompilerParams(
            dimension_semantics=("parallel",)),
    )(th, tw)
    return mask_i8.astype(jnp.bool_)


# ---------------------------------------------------------------------------
# Glue: MaskedBackbone.forward with a synthetic per-level patchify-conv backbone
# ---------------------------------------------------------------------------
def masked_backbone_forward(images_nchw, image_sizes_hw, params, feature_strides):
    """Mimics MaskedBackbone.forward.

    images_nchw   : (N, C, H, W) f32 padded batch (like ImageList.tensor)
    image_sizes_hw: (N, 2) int32 per-image valid (h, w)
    params        : per level (w2 bf16 (s*s*C, Cpad), bias f32 (1, Cpad), c_out)
    Returns dict: level_name -> (feature NHWC bf16 (N, Hs, Ws, c_out or Cpad),
                                 padding mask bool (N, Hs, Ws))
    (stand-in for NestedTensor(feature, mask)).  Features stay NHWC/bf16 and keep
    their 128-lane channel padding when c_out is already a lane multiple, so the
    downstream DETR input_proj (1x1 conv) consumes them without an extra HBM pass.
    """
    N, C, H, W = images_nchw.shape
    # One up-front NCHW->NHWC conversion + bf16 cast for the memory-bound kernel.
    images_nhwc = jnp.transpose(images_nchw, (0, 2, 3, 1)).astype(jnp.bfloat16)
    out = {}
    for lvl, stride in enumerate(feature_strides):
        w2, bias, c_out = params[lvl]
        patches, Hs, Ws = im2col_level(images_nhwc, stride)
        feat_flat = patchify_conv_level(patches, w2, bias)        # (N, Hs*Ws, Cpad)
        Cpad = w2.shape[-1]
        feat = feat_flat.reshape(N, Hs, Ws, Cpad)                 # free reshape
        if c_out != Cpad:
            # Only pay the extra HBM pass when channels are not lane-aligned.
            feat = feat[..., :c_out]
        mask = mask_out_padding_level(image_sizes_hw, stride, N, Hs, Ws)
        out[f"res{lvl}"] = (feat, mask)
    return out


if __name__ == "__main__":
    key = jax.random.PRNGKey(0)

    # Small deterministic config
    N, C_in, H, W = 2, 4, 16, 16
    feature_strides = [4, 8]          # two feature levels
    num_channels = 128                # lane-dense backbone output channels per level

    k_img, k_w0, k_b0, k_w1, k_b1 = jax.random.split(key, 5)
    images = jax.random.normal(k_img, (N, C_in, H, W), dtype=jnp.float32)
    # per-image valid sizes (the rest is padding), like ImageList.image_sizes
    image_sizes_hw = jnp.array([[13, 16], [16, 10]], dtype=jnp.int32)

    # Deterministic synthetic backbone params: per level a (s*s*C, C_out) weight
    # (im2col layout: K = s_row * s_col * C, row-major) + bias.  C_out == 128 is
    # already a lane multiple, so no channel padding / post-slice is needed.
    params = []
    for stride, kw, kb in [(4, k_w0, k_b0), (8, k_w1, k_b1)]:
        K = stride * stride * C_in
        w = jax.random.normal(kw, (K, num_channels), dtype=jnp.float32) * 0.02
        bvec = jax.random.normal(kb, (1, num_channels), dtype=jnp.float32) * 0.01
        params.append((w.astype(jnp.bfloat16), bvec, num_channels))

    feats = masked_backbone_forward(images, image_sizes_hw, params, feature_strides)
    jax.block_until_ready(feats)

    # Correctness checks against a plain-JAX reference (same bf16 input rounding).
    images_nhwc_f32 = jnp.transpose(images, (0, 2, 3, 1)).astype(jnp.bfloat16).astype(jnp.float32)
    for lvl, s in enumerate(feature_strides):
        feat, mask = feats[f"res{lvl}"]
        Hs, Ws = H // s, W // s
        x6 = images_nhwc_f32.reshape(N, Hs, s, Ws, s, C_in)
        x6 = jnp.transpose(x6, (0, 1, 3, 2, 4, 5))
        patches_ref = x6.reshape(N, Hs, Ws, s * s * C_in)
        w2, bvec, c_out = params[lvl]
        ref = jnp.einsum("nhwk,kc->nhwc", patches_ref, w2.astype(jnp.float32)) + bvec
        assert np.allclose(np.asarray(feat, dtype=np.float32), np.asarray(ref),
                           atol=2e-2, rtol=2e-2), "feature mismatch"

        # mask reference (PyTorch mask_out_padding semantics)
        ref_mask = np.ones((N, Hs, Ws), dtype=bool)
        for n in range(N):
            h_n, w_n = np.asarray(image_sizes_hw[n])
            ref_mask[n, : int(np.ceil(float(h_n) / s)), : int(np.ceil(float(w_n) / s))] = False
        assert np.array_equal(np.asarray(mask), ref_mask), "mask mismatch"

    print("KERNEL_OK")
</pallas_src>

<mosaic_0001>
module attributes {stable_mosaic.version = 11 : i64} {
  func.func @_patchconv_kernel(%arg0: i32, %arg1: i32, %arg2: memref<1x16x64xbf16, #tpu.memory_space<vmem>>, %arg3: memref<64x128xbf16, #tpu.memory_space<vmem>>, %arg4: memref<1x128xf32, #tpu.memory_space<vmem>>, %arg5: memref<1x16x128xbf16, #tpu.memory_space<vmem>>) attributes {dimension_semantics = [#tpu.dimension_semantics<parallel>, #tpu.dimension_semantics<parallel>], iteration_bounds = array<i64: 1, 2>, scalar_prefetch = 0 : i64, scratch_operands = 0 : i64, tpu.core_type = #tpu.core_type<tc>, window_params = [{transform_indices = @transform_0, window_bounds = array<i64: 1, 16, 64>}, {pipeline_mode = #tpu.pipeline_mode<synchronous>, transform_indices = @transform_1, window_bounds = array<i64: 64, 128>}, {pipeline_mode = #tpu.pipeline_mode<synchronous>, transform_indices = @transform_2, window_bounds = array<i64: 1, 128>}, {transform_indices = @transform_3, window_bounds = array<i64: 1, 16, 128>}]} {
    %c0 = arith.constant 0 : index
    %c0_0 = arith.constant 0 : index
    %c0_1 = arith.constant 0 : index
    %0 = vector.load %arg2[%c0, %c0_0, %c0_1] : memref<1x16x64xbf16, #tpu.memory_space<vmem>>, vector<1x16x64xbf16>
    %1 = vector.shape_cast %0 : vector<1x16x64xbf16> to vector<16x64xbf16>
    %c0_2 = arith.constant 0 : index
    %c0_3 = arith.constant 0 : index
    %2 = vector.load %arg3[%c0_2, %c0_3] : memref<64x128xbf16, #tpu.memory_space<vmem>>, vector<64x128xbf16>
    %cst = arith.constant dense<0.000000e+00> : vector<16x128xf32>
    %3 = tpu.matmul %1, %2, %cst {dimension_numbers = #tpu.dot_dimension_numbers<[1], [0], [0], [1], [0, 0, 1, 1], [], []>} : vector<16x64xbf16>, vector<64x128xbf16>, vector<16x128xf32> -> vector<16x128xf32>
    %c0_4 = arith.constant 0 : index
    %c0_5 = arith.constant 0 : index
    %4 = vector.load %arg4[%c0_4, %c0_5] : memref<1x128xf32, #tpu.memory_space<vmem>>, vector<1x128xf32>
    %5 = vector.broadcast %4 : vector<1x128xf32> to vector<16x128xf32>
    %6 = arith.addf %3, %5 : vector<16x128xf32>
    %7 = arith.truncf %6 : vector<16x128xf32> to vector<16x128xbf16>
    %c0_6 = arith.constant 0 : index
    %c0_7 = arith.constant 0 : index
    %c0_8 = arith.constant 0 : index
    %8 = vector.load %arg5[%c0_6, %c0_7, %c0_8] : memref<1x16x128xbf16, #tpu.memory_space<vmem>>, vector<1x16x128xbf16>
    %9 = vector.shape_cast %8 : vector<1x16x128xbf16> to vector<16x128xbf16>
    %10 = vector.shape_cast %7 : vector<16x128xbf16> to vector<1x16x128xbf16>
    tpu.vector_store %arg5[%c0_6, %c0_7, %c0_8], %10 {strides = array<i32>} : memref<1x16x128xbf16, #tpu.memory_space<vmem>>, vector<1x16x128xbf16>,
    return
  }
  func.func @transform_0(%arg0: i32, %arg1: i32) -> (i32, i32, i32) {
    %c0_i32 = arith.constant 0 : i32
    %c0_i32_0 = arith.constant 0 : i32
    return %arg1, %arg0, %c0_i32 : i32, i32, i32
  }
  func.func @transform_1(%arg0: i32, %arg1: i32) -> (i32, i32) {
    %c0_i32 = arith.constant 0 : i32
    %c0_i32_0 = arith.constant 0 : i32
    %c0_i32_1 = arith.constant 0 : i32
    return %c0_i32, %c0_i32_0 : i32, i32
  }
  func.func @transform_2(%arg0: i32, %arg1: i32) -> (i32, i32) {
    %c0_i32 = arith.constant 0 : i32
    %c0_i32_0 = arith.constant 0 : i32
    %c0_i32_1 = arith.constant 0 : i32
    return %c0_i32, %c0_i32_0 : i32, i32
  }
  func.func @transform_3(%arg0: i32, %arg1: i32) -> (i32, i32, i32) {
    %c0_i32 = arith.constant 0 : i32
    %c0_i32_0 = arith.constant 0 : i32
    return %arg1, %arg0, %c0_i32 : i32, i32, i32
  }
}

</mosaic_0001>

<llo_original>
// kernel: tpu_custom_call.1
$region0: #{tpu_custom_call.1}
  #allocation0 [shape = 'u32[]', space=smem, size = 0x4, offset = 0x4, fixed_abs, tag = 'smem constant byte address 0x4 - core index']
  #allocation1 [shape = 'u32[144,128]{1,0:T(1,128)}', space=vmem, size = 0x12000, scoped, tag = 'internal scratch']
  %s0 = inlined_call_operand.hbm [shape: bf16[2,16,64], index: 0, kind: input, shape index: {}]
  %s1 = inlined_call_operand.hbm [shape: bf16[64,128], index: 1, kind: input, shape index: {}]
  %s2 = inlined_call_operand.hbm [shape: f32[1,128], index: 2, kind: input, shape index: {}]
  %s3 = inlined_call_operand.hbm [shape: bf16[2,16,128], index: 3, kind: output, shape index: {}]
  %s4 = sld [smem:[#allocation0]]
  $region57: #{tpu_custom_call.1} parent=0
    _
  %s6 = ssub.s32 1, %s4
  %s7 = scalar_select 0, %s6, %s4
  $region1: #{tpu_custom_call.1} parent=0
    #allocation2 [shape = 'u8[8192]{0}', space=vmem, size = 0x2000, scoped, tag = 'input window, operand 0']
    #allocation3 [shape = 's32[2]{0}', space=sflag, size = 0x8, scoped, tag = 'scoped memory for tpu_custom_call.1']
    #allocation4 [shape = 's32[2]{0}', space=sflag, size = 0x8, scoped, tag = 'scoped memory for tpu_custom_call.1']
    #allocation5 [shape = 'u8[16384]{0}', space=vmem, size = 0x4000, scoped, tag = 'input window, operand 1, single buffered']
    #allocation6 [shape = 's32[1]{0}', space=sflag, size = 0x4, scoped, tag = 'scoped memory for tpu_custom_call.1']
    #allocation7 [shape = 'u8[512]{0}', space=vmem, size = 0x400, scoped, tag = 'input window, operand 2, single buffered']
    #allocation8 [shape = 'u8[8192]{0}', space=vmem, size = 0x2000, scoped, tag = 'output window, operand 0']
    %8 = vsyncpa [#allocation3], 0
    %s9 = scalar_lea.sflag [#allocation3], 1
    %10 = vsyncpa %s9, 0
    %11 = vsyncpa [#allocation6], 0
    %12 = vsyncpa [#allocation4], 0
    %s13 = scalar_lea.sflag [#allocation4], 1
    %14 = vsyncpa %s13, 0
    loop: start=0, step=1, limit=4
    $region2: #{tpu_custom_call.1} parent=1 // loop_pre_header
      _
    $region3: #{tpu_custom_call.1} parent=1 // loop_header
      %s16 = sphi 0, %s20
      %p17 = scmp.ge.s32.totalorder %s16, 4
      %s23 = sphi 0, %s35
      %s24 = sphi 0, %s31
      %s25 = sphi 0, %s23
      %s26 = sphi 0, %s24
      %s27 = sphi 0, %s25
      %s28 = sphi 0, %s26
      %s40 = sphi 0, %s42
      %s43 = sphi 0, %s40
      %s44 = sphi 0, %s43
      %s60 = sphi 0, %s44
      %s64 = sphi 0, %s64
      %s66 = sphi 0, %s64
      %s67 = sphi 0, %s66
      %s81 = sphi 0, %s67
      %s85 = sphi 0, %s85
      %s87 = sphi 0, %s85
      %s88 = sphi 0, %s87
      %s102 = sphi 0, %s88
      %s110 = sphi 0, %s112
      %s113 = sphi 0, %s110
      %s114 = sphi 0, %s113
      %s130 = sphi 0, %s114
    $region4: #{tpu_custom_call.1} parent=1 // loop_header_branch
      %19 = sbr.rel (%p17) target = $region8
    $region5: #{tpu_custom_call.1} parent=1 // loop_body
      %s21 = ssub.s32 %s16, 1
      %s22 = ssub.s32 %s16, 2
      %s29 = sadd.s32 1, %s24
      %p30 = scmp.ge.s32.totalorder %s29, 2
      %s31 = scalar_select %p30, 0, %s29
      %s32 = sadd.s32 1, %s23
      %s33 = scalar_select %p30, %s32, %s23
      %p34 = scmp.ge.s32.totalorder %s33, 1
      %s35 = scalar_select %p34, 0, %s33
      %s36 = ssub.s32 %s24, %s31
      %s37 = ssub.s32 %s23, %s35
      %s38 = sor.u32 %s36, %s37
      %p39 = scmp.eq.s32.totalorder %s38, 0
      %s41 = sadd.s32 %s40, 1
      %s42 = scalar_select %p39, %s40, %s41
      %p45 = pneg %p39
      %p46 = scmp.eq.s32.totalorder %s16, 1
      %p47 = por %p45, %p46
      %p48 = scmp.ne.s32.totalorder %s40, %s43
      %p49 = scmp.eq.s32.totalorder %s16, 0
      %p50 = por %p48, %p49
      %p51 = scmp.ne.s32.totalorder %s40, %s43
      %p52 = scmp.eq.s32.totalorder %s21, 1
      %p53 = por %p51, %p52
      %p54 = scmp.ne.s32.totalorder %s43, %s44
      %p55 = scmp.eq.s32.totalorder %s21, 0
      %p56 = por %p54, %p55
      %p57 = scmp.ne.s32.totalorder %s43, %s44
      %p58 = scmp.eq.s32.totalorder %s22, 1
      %p59 = por %p57, %p58
      %p61 = scmp.ne.s32.totalorder %s44, %s60
      %p62 = scmp.eq.s32.totalorder %s22, 0
      %p63 = por %p61, %p62
      %s65 = sadd.s32 %s64, 1
      %p68 = scmp.eq.s32.totalorder %s16, 1
      %p69 = scmp.ne.s32.totalorder %s64, %s66
      %p70 = scmp.eq.s32.totalorder %s16, 0
      %p71 = por %p69, %p70
      %p72 = scmp.ne.s32.totalorder %s64, %s66
      %p73 = scmp.eq.s32.totalorder %s21, 1
      %p74 = por %p72, %p73
      %p75 = scmp.ne.s32.totalorder %s66, %s67
      %p76 = scmp.eq.s32.totalorder %s21, 0
      %p77 = por %p75, %p76
      %p78 = scmp.ne.s32.totalorder %s66, %s67
      %p79 = scmp.eq.s32.totalorder %s22, 1
      %p80 = por %p78, %p79
      %p82 = scmp.ne.s32.totalorder %s67, %s81
      %p83 = scmp.eq.s32.totalorder %s22, 0
      %p84 = por %p82, %p83
      %s86 = sadd.s32 %s85, 1
      %p89 = scmp.eq.s32.totalorder %s16, 1
      %p90 = scmp.ne.s32.totalorder %s85, %s87
      %p91 = scmp.eq.s32.totalorder %s16, 0
      %p92 = por %p90, %p91
      %p93 = scmp.ne.s32.totalorder %s85, %s87
      %p94 = scmp.eq.s32.totalorder %s21, 1
      %p95 = por %p93, %p94
      %p96 = scmp.ne.s32.totalorder %s87, %s88
      %p97 = scmp.eq.s32.totalorder %s21, 0
      %p98 = por %p96, %p97
      %p99 = scmp.ne.s32.totalorder %s87, %s88
      %p100 = scmp.eq.s32.totalorder %s22, 1
      %p101 = por %p99, %p100
      %p103 = scmp.ne.s32.totalorder %s88, %s102
      %p104 = scmp.eq.s32.totalorder %s22, 0
      %p105 = por %p103, %p104
      %s106 = ssub.s32 %s24, %s31
      %s107 = ssub.s32 %s23, %s35
      %s108 = sor.u32 %s106, %s107
      %p109 = scmp.eq.s32.totalorder %s108, 0
      %s111 = sadd.s32 %s110, 1
      %s112 = scalar_select %p109, %s110, %s111
      %p115 = pneg %p109
      %p116 = scmp.eq.s32.totalorder %s16, 1
      %p117 = por %p115, %p116
      %p118 = scmp.ne.s32.totalorder %s110, %s113
      %p119 = scmp.eq.s32.totalorder %s16, 0
      %p120 = por %p118, %p119
      %p121 = scmp.ne.s32.totalorder %s110, %s113
      %p122 = scmp.eq.s32.totalorder %s21, 1
      %p123 = por %p121, %p122
      %p124 = scmp.ne.s32.totalorder %s113, %s114
      %p125 = scmp.eq.s32.totalorder %s21, 0
      %p126 = por %p124, %p125
      %p127 = scmp.ne.s32.totalorder %s113, %s114
      %p128 = scmp.eq.s32.totalorder %s22, 1
      %p129 = por %p127, %p128
      %p131 = scmp.ne.s32.totalorder %s114, %s130
      %p132 = scmp.eq.s32.totalorder %s22, 0
      %p133 = por %p131, %p132
      %p134 = scmp.le.s32.totalorder 1, %s16
      %p135 = scmp.lt.s32.totalorder %s16, 3
      %p136 = pnand %p134, %p135
      %p137 = pneg %p136
      // Predicated region
      $region9: #{tpu_custom_call.1} parent=5 // pred_check
        _
      $region10: #{tpu_custom_call.1} parent=5 // pred_check_branch
        %139 = sbr.rel (%p136) target = $region12
      $region11: #{tpu_custom_call.1} parent=5 // pred_region
        %s140 = ssub.s32 %s16, 1
        // Predicated region
        $region13: #{tpu_custom_call.1} parent=11 // pred_check
          %p141 = pneg %p77
        $region14: #{tpu_custom_call.1} parent=11 // pred_check_branch
          %143 = sbr.rel (%p141) target = $region16
        $region15: #{tpu_custom_call.1} parent=11 // pred_region
          %s145 = ssub.s32 512, 512
          %146 = vsyncadd [#allocation6], %s145
          %s147 = sshll.u32 [#allocation5], 4
          %s148 = int_to_ptr.vmem [resolvable:$true] %s147
          %153 = dma.hbm_to_vmem [thread:$0]  %s1, 512, %s148, [#allocation6], 64, 64, 4
        $region16: #{tpu_custom_call.1} parent=11 // pred_fallthru
          _
        // Predicated region
        $region17: #{tpu_custom_call.1} parent=11 // pred_check
          %p154 = pneg %p98
        $region18: #{tpu_custom_call.1} parent=11 // pred_check_branch
          %156 = sbr.rel (%p154) target = $region20
        $region19: #{tpu_custom_call.1} parent=11 // pred_region
          %s158 = ssub.s32 16, 16
          %159 = vsyncadd [#allocation6], %s158
          %s161 = sshll.u32 [#allocation7], 4
          %s162 = int_to_ptr.vmem [resolvable:$true] %s161
          %164 = dma.hbm_to_vmem [thread:$0]  %s2, 16, %s162, [#allocation6]
        $region20: #{tpu_custom_call.1} parent=11 // pred_fallthru
          _
      $region12: #{tpu_custom_call.1} parent=5 // pred_fallthru
        _
      %p165 = scmp.lt.s32.totalorder %s16, 2
      // Predicated region
      $region21: #{tpu_custom_call.1} parent=5 // pred_check
        %p166 = pneg %p165
      $region22: #{tpu_custom_call.1} parent=5 // pred_check_branch
        %168 = sbr.rel (%p166) target = $region24
      $region23: #{tpu_custom_call.1} parent=5 // pred_region
        // Predicated region
        $region25: #{tpu_custom_call.1} parent=23 // pred_check
          %p169 = pneg %p50
        $region26: #{tpu_custom_call.1} parent=23 // pred_check_branch
          %171 = sbr.rel (%p169) target = $region28
        $region27: #{tpu_custom_call.1} parent=23 // pred_region
          %s172 = sand.u32 %s40, 1
          %s173 = scalar_lea.sflag [#allocation3], %s172
          %s174 = sand.u32 %s40, 1
          %s175 = smul.addr %s174, 8
          %s176 = scalar_lea.vmem [#allocation2], %s175
          %s177 = smul.u32 2, %s23
          %s179 = ssub.s32 128, 128
          %180 = vsyncadd %s173, %s179
          %s181 = smul.addr %s24, 2
          %s182 = sadd.s32 %s177, %s181
          %s183 = smul.addr %s182, 64
          %s184 = scalar_lea.hbm %s0, %s183
          %s185 = sshll.u32 %s176, 4
          %s186 = int_to_ptr.vmem [resolvable:$true] %s185
          %191 = dma.hbm_to_vmem [thread:$0]  %s184, 128, %s186, %s173, 64, 64, 4
        $region28: #{tpu_custom_call.1} parent=23 // pred_fallthru
          _
      $region24: #{tpu_custom_call.1} parent=5 // pred_fallthru
        _
      %p192 = scmp.le.s32.totalorder 1, %s16
      %p193 = scmp.lt.s32.totalorder %s16, 3
      %p194 = pnand %p192, %p193
      %p195 = pneg %p194
      // Predicated region
      $region29: #{tpu_custom_call.1} parent=5 // pred_check
        _
      $region30: #{tpu_custom_call.1} parent=5 // pred_check_branch
        %197 = sbr.rel (%p194) target = $region32
      $region31: #{tpu_custom_call.1} parent=5 // pred_region
        %s198 = ssub.s32 %s16, 1
        %s199 = sand.u32 %s43, 1
        %s200 = scalar_lea.sflag [#allocation3], %s199
        %s201 = sand.u32 %s43, 1
        %s202 = smul.addr %s201, 8
        %s203 = scalar_lea.vmem [#allocation2], %s202
        // Predicated region
        $region33: #{tpu_custom_call.1} parent=31 // pred_check
          %p204 = pneg %p56
        $region34: #{tpu_custom_call.1} parent=31 // pred_check_branch
          %206 = sbr.rel (%p204) target = $region36
        $region35: #{tpu_custom_call.1} parent=31 // pred_region
          %207 = dma.done %s200, 128
        $region36: #{tpu_custom_call.1} parent=31 // pred_fallthru
          _
        // Predicated region
        $region37: #{tpu_custom_call.1} parent=31 // pred_check
          %p208 = pneg %p77
        $region38: #{tpu_custom_call.1} parent=31 // pred_check_branch
          %210 = sbr.rel (%p208) target = $region40
        $region39: #{tpu_custom_call.1} parent=31 // pred_region
          %211 = dma.done [#allocation6], 512
        $region40: #{tpu_custom_call.1} parent=31 // pred_fallthru
          _
        // Predicated region
        $region41: #{tpu_custom_call.1} parent=31 // pred_check
          %p212 = pneg %p98
        $region42: #{tpu_custom_call.1} parent=31 // pred_check_branch
          %214 = sbr.rel (%p212) target = $region44
        $region43: #{tpu_custom_call.1} parent=31 // pred_region
          %215 = dma.done [#allocation6], 16
        $region44: #{tpu_custom_call.1} parent=31 // pred_fallthru
          _
        %s216 = sand.u32 %s43, 1
        %s217 = scalar_lea.sflag [#allocation3], %s216
        %s218 = sand.u32 %s43, 1
        %s219 = smul.addr %s218, 8
        %s220 = scalar_lea.vmem [#allocation2], %s219
        %p221 = pneg %p56
        %p222 = pneg %p53
        %p223 = pneg %p77
        %p224 = pneg %p74
        %p225 = pneg %p98
        %p226 = pneg %p95
        %p227 = pneg %p126
        %p228 = pneg %p123
        %s229 = sand.u32 %s113, 1
        %s230 = scalar_lea.sflag [#allocation4], %s229
        %s231 = sand.u32 %s113, 1
        %s232 = smul.addr %s231, 8
        %s233 = scalar_lea.vmem [#allocation8], %s232
        %s234 = smul.u32 2, %s25
        %s235 = smul.u32 2, %s25
        %v237 = vld [vmem:[%s203] sm:$0xf]
        %v238 = vld [vmem:[%s203 + $0x4] sm:$0xf]
        %v239 = vld [vmem:[#allocation5] sm:$0xf]
        %v240 = vld [vmem:[#allocation5 + $0x4] sm:$0xf]
        %v241 = vld [vmem:[#allocation5 + $0x8] sm:$0xf]
        %v242 = vld [vmem:[#allocation5 + $0xc] sm:$0xf]
        %v243 = vld [vmem:[#allocation5 + $0x10] sm:$0xf]
        %v244 = vld [vmem:[#allocation5 + $0x14] sm:$0xf]
        %v245 = vld [vmem:[#allocation5 + $0x18] sm:$0xf]
        %v246 = vld [vmem:[#allocation5 + $0x1c] sm:$0xf]
        %v247 = vld [vmem:[#allocation7] sm:$0x1]
        %v249 = vlaneseq
        %v250 = vshrl.u32 %v249, 7
        %v251 = vsub.s32 0, %v250
        %v252 = vrot.slane %v247, %v251
        %v256 = vunpack.c.l.b16 %v237
        %v257 = vunpack.c.l.b16 %v238
        %v258 = vpack.c.b16 %v257, %v256
        %v267 = vunpack.c.l.b16 %v239
        %v268 = vunpack.c.l.b16 %v240
        %v269 = vunpack.c.l.b16 %v241
        %v270 = vunpack.c.l.b16 %v242
        %v271 = vunpack.c.l.b16 %v243
        %v272 = vunpack.c.l.b16 %v244
        %v273 = vunpack.c.l.b16 %v245
        %v274 = vunpack.c.l.b16 %v246
        %v275 = vpack.c.b16 %v268, %v267
        %v276 = vpack.c.b16 %v270, %v269
        %v277 = vpack.c.b16 %v272, %v271
        %v278 = vpack.c.b16 %v274, %v273
        %vm283 = vcmask 523264
        %v285 = vsel %vm283, %v258, 0
        %287 = vmatprep.subr.bf16.mxu0 0
        %288 = vmatpush1.bf16.msra.mxu0 %v275
        %289 = vmatprep.subr.bf16.mxu0 0
        %290 = vmatpush1.bf16.msra.mxu0 %v276
        %291 = vmatprep.subr.bf16.mxu0 0
        %292 = vmatpush1.bf16.msra.mxu0 %v277
        %293 = vmatprep.subr.bf16.mxu0 0
        %294 = vmatpush1.bf16.msra.mxu0 %v278
        %295 = vmatprep.subr.bf16.mxu0 0
        %296 = vmatpush1.bf16.msra.mxu0 0
        %297 = vmatprep.subr.bf16.mxu0 0
        %298 = vmatpush1.bf16.msra.mxu0 0
        %299 = vmatprep.subr.bf16.mxu0 0
        %300 = vmatpush1.bf16.msra.mxu0 0
        %301 = vmatprep.subr.bf16.mxu0 0
        %302 = vmatpush1.bf16.msra.mxu0 0
        %303 = vmatprep.subr.bf16.mxu0 0
        %304 = vmatpush1.bf16.msra.mxu0 0
        %305 = vmatprep.subr.bf16.mxu0 0
        %306 = vmatpush1.bf16.msra.mxu0 0
        %307 = vmatprep.subr.bf16.mxu0 0
        %308 = vmatpush1.bf16.msra.mxu0 0
        %309 = vmatprep.subr.bf16.mxu0 0
        %310 = vmatpush1.bf16.msra.mxu0 0
        %311 = vmatprep.subr.bf16.mxu0 0
        %312 = vmatpush1.bf16.msra.mxu0 0
        %313 = vmatprep.subr.bf16.mxu0 0
        %314 = vmatpush1.bf16.msra.mxu0 0
        %315 = vmatprep.subr.bf16.mxu0 0
        %316 = vmatpush1.bf16.msra.mxu0 0
        %317 = vmatprep.subr.bf16.mxu0 0
        %318 = vmatpush1.bf16.msra.mxu0 0
        %319 = vmatprep.mubr.bf16.mxu0 0
        %320 = vmatmul.mubr.bf16.gmra.mrb[0].mxu0 %v285
        %v321 = vpop.f32.mrb[0].mxu0
        %v322 = vadd.f32 %v252, %v321
        %v323 = vpop.f32.mrb[0].mxu0
        %v324 = vpop.f32.mrb[0].mxu0
        %v325 = vadd.f32 %v252, %v324
        %v326 = vpop.f32.mrb[0].mxu0
        %327 = vdwg.mxu0
        %v328 = vpack.c.bf16 %v325, %v322
        %v330 = vunpack.c.l.b16 %v328
        %v331 = vunpack.c.h.b16 %v328
        %v332 = vpack.c.b16 %v330, %v330
        %v333 = vpack.c.b16 %v331, %v331
        %336 = vst [vmem:[%s233] sm:$0xf] %v332
        %337 = vst [vmem:[%s233 + $0x4] sm:$0xf] %v333
        %s338 = sand.u32 %s113, 1
        %s339 = scalar_lea.sflag [#allocation4], %s338
        %s340 = sand.u32 %s113, 1
        %s341 = smul.addr %s340, 8
        %s342 = scalar_lea.vmem [#allocation8], %s341
        // Predicated region
        $region45: #{tpu_custom_call.1} parent=31 // pred_check
          %p343 = pneg %p123
        $region46: #{tpu_custom_call.1} parent=31 // pred_check_branch
          %345 = sbr.rel (%p343) target = $region48
        $region47: #{tpu_custom_call.1} parent=31 // pred_region
          %s346 = smul.u32 2, %s25
          %s348 = ssub.s32 128, 128
          %349 = vsyncadd %s339, %s348
          %s350 = smul.addr %s26, 2
          %s351 = sadd.s32 %s346, %s350
          %s352 = smul.addr %s351, 64
          %s353 = scalar_lea.hbm %s3, %s352
          %s354 = sshll.u32 %s342, 4
          %s355 = int_to_ptr.vmem [resolvable:$true] %s354
          %360 = dma.vmem_to_hbm [thread:$0]  %s355, 128, %s353, %s339, 64, 64, 4
        $region48: #{tpu_custom_call.1} parent=31 // pred_fallthru
          _
      $region32: #{tpu_custom_call.1} parent=5 // pred_fallthru
        _
      %p361 = scmp.le.s32.totalorder 2, %s16
      // Predicated region
      $region49: #{tpu_custom_call.1} parent=5 // pred_check
        %p362 = pneg %p361
      $region50: #{tpu_custom_call.1} parent=5 // pred_check_branch
        %364 = sbr.rel (%p362) target = $region52
      $region51: #{tpu_custom_call.1} parent=5 // pred_region
        %s365 = ssub.s32 %s16, 2
        // Predicated region
        $region53: #{tpu_custom_call.1} parent=51 // pred_check
          %p366 = pneg %p129
        $region54: #{tpu_custom_call.1} parent=51 // pred_check_branch
          %368 = sbr.rel (%p366) target = $region56
        $region55: #{tpu_custom_call.1} parent=51 // pred_region
          %s369 = sand.u32 %s114, 1
          %s370 = scalar_lea.sflag [#allocation4], %s369
          %s371 = sand.u32 %s114, 1
          %s372 = smul.addr %s371, 8
          %s373 = scalar_lea.vmem [#allocation8], %s372
          %374 = dma.done %s370, 128
        $region56: #{tpu_custom_call.1} parent=51 // pred_fallthru
          _
      $region52: #{tpu_custom_call.1} parent=5 // pred_fallthru
        _
    $region6: #{tpu_custom_call.1} parent=1 // loop_footer
      %s20 = sadd.s32 1, %s16
    $region7: #{tpu_custom_call.1} parent=1 // loop_footer_branch
      %15 = sbr.rel target = $region3
    $region8: #{tpu_custom_call.1} parent=1 // loop_exit
      _
    %375 = vsyncpa [#allocation3], 1
    %s376 = scalar_lea.sflag [#allocation3], 1
    %377 = vsyncpa %s376, 1
    %378 = vsyncpa [#allocation6], 1
    %379 = vsyncpa [#allocation4], 1
    %s380 = scalar_lea.sflag [#allocation4], 1
    %381 = vsyncpa %s380, 1

</llo_original>
